<compile_context>
chip_gen: v5e
topology: v5e:2x2
jax: 0.10.0
libtpu: 0.0.40
codegen_flags: <defaults>
</compile_context>

<pallas_src>
import math

import jax
import jax.numpy as jnp
from jax.experimental import pallas as pl
from jax.experimental.pallas import tpu as pltpu

LANE = 128      # vreg lane width
SUBLANE = 8     # vreg sublane count (f32)

_SQRT_2_OVER_PI = 0.7978845608028654


def _round_up(x: int, m: int) -> int:
    return ((x + m - 1) // m) * m


def _gelu_tanh(x):
    # tanh-form GELU (|err| vs exact erf-GELU < ~1e-3): few VALU ops + 1 EUP tanh.
    return 0.5 * x * (1.0 + jnp.tanh(_SQRT_2_OVER_PI * (x + 0.044715 * x * x * x)))


def _erf(x):
    # Abramowitz & Stegun 7.1.26 (|err| < 1.5e-7).  Exact divide (no approx
    # reciprocal) so the polynomial's accuracy claim actually holds.
    a1, a2, a3, a4, a5 = (0.254829592, -0.284496736, 1.421413741,
                          -1.453152027, 1.061405429)
    p = 0.3275911
    sgn = jnp.where(x >= 0.0, 1.0, -1.0)
    ax = jnp.abs(x)
    t = 1.0 / (1.0 + p * ax)
    poly = ((((a5 * t + a4) * t + a3) * t + a2) * t + a1) * t
    return sgn * (1.0 - poly * jnp.exp(-ax * ax))


def _gelu_erf(x):
    return 0.5 * x * (1.0 + _erf(x * (1.0 / math.sqrt(2.0))))


def _make_ffn_kernel(use_bf16_matmul: bool, gelu_mode: str):
    gelu = _gelu_tanh if gelu_mode == "tanh" else _gelu_erf

    def kernel(x_ref, w1_ref, b1_ref, w2_ref, b2_ref, o_ref, acc_ref):
        k = pl.program_id(1)                     # d_ff (reduction) axis

        @pl.when(k == 0)
        def _():
            acc_ref[...] = jnp.zeros_like(acc_ref)

        x = x_ref[...]
        w1 = w1_ref[...]
        w2 = w2_ref[...]
        if use_bf16_matmul:                      # bf16 MXU inputs, f32 accumulation
            x = x.astype(jnp.bfloat16)
            w1 = w1.astype(jnp.bfloat16)
            w2 = w2.astype(jnp.bfloat16)

        # fc1 + bias + GELU for this d_ff tile (elementwise math stays f32).
        h = jnp.dot(x, w1, preferred_element_type=jnp.float32) + b1_ref[...]
        h = gelu(h)
        if use_bf16_matmul:
            h = h.astype(jnp.bfloat16)

        # fc2 partial product for this d_ff tile, accumulated in f32 scratch.
        acc_ref[...] += jnp.dot(h, w2, preferred_element_type=jnp.float32)

        @pl.when(k == pl.num_programs(1) - 1)
        def _():
            o_ref[...] = acc_ref[...] + b2_ref[...]

    return kernel


def _estimate_vmem_bytes(tm, tf, d_model, d_out_p):
    # Rough upper bound: double-buffered input/output tiles + f32 accumulator.
    per_step = (tm * d_model + d_model * tf + tf + tf * d_out_p + d_out_p
                + tm * d_out_p) * 4
    return 2 * per_step + tm * d_out_p * 4


def positionwise_ffn(x, w1, b1, w2, b2, *, tile_m=1024,
                     use_bf16_matmul=True, gelu_mode="tanh"):
    """fc2(GELU(fc1(x))).  Weights stored as (d_in, d_out) = torch weight^T."""
    orig_shape = x.shape
    d_model = orig_shape[-1]
    d_ff = w1.shape[1]
    assert w1.shape == (d_model, d_ff) and w2.shape == (d_ff, d_model)
    assert b1.shape == (d_ff,) and b2.shape == (d_model,)

    x2d = x.reshape(-1, d_model).astype(jnp.float32)
    n = x2d.shape[0]

    # Lane-dense output width: pad the output d_model up to a multiple of 128.
    d_out_p = _round_up(d_model, LANE)

    # Tile sizing with a conservative VMEM-budget guard (fits default scoped
    # limits on v5e/v6e/v7x).
    tm = _round_up(min(tile_m, _round_up(n, SUBLANE)), SUBLANE)
    tf = _round_up(d_ff, LANE)
    budget = 12 * 1024 * 1024
    while _estimate_vmem_bytes(tm, tf, d_model, d_out_p) > budget and tf > LANE:
        tf = _round_up(tf // 2, LANE)
    while _estimate_vmem_bytes(tm, tf, d_model, d_out_p) > budget and tm > SUBLANE:
        tm = _round_up(tm // 2, SUBLANE)
    # TODO(synk): also tile the d_model contraction of fc1 if d_model alone ever
    # exceeds the VMEM budget (not needed for typical FFN shapes).

    d_ff_p = _round_up(d_ff, tf)
    n_p = _round_up(n, tm)

    f32 = jnp.float32
    xp = jnp.pad(x2d, ((0, n_p - n), (0, 0)))
    w1p = jnp.pad(w1.astype(f32), ((0, 0), (0, d_ff_p - d_ff)))
    b1p = jnp.pad(b1.astype(f32).reshape(1, d_ff), ((0, 0), (0, d_ff_p - d_ff)))
    w2p = jnp.pad(w2.astype(f32), ((0, d_ff_p - d_ff), (0, d_out_p - d_model)))
    b2p = jnp.pad(b2.astype(f32).reshape(1, d_model),
                  ((0, 0), (0, d_out_p - d_model)))

    grid = (n_p // tm, d_ff_p // tf)
    kernel = _make_ffn_kernel(use_bf16_matmul, gelu_mode)

    out = pl.pallas_call(
        kernel,
        out_shape=jax.ShapeDtypeStruct((n_p, d_out_p), f32),
        grid_spec=pltpu.PrefetchScalarGridSpec(
            num_scalar_prefetch=0,
            grid=grid,
            in_specs=[
                pl.BlockSpec((tm, d_model), lambda i, k: (i, 0)),
                pl.BlockSpec((d_model, tf), lambda i, k: (0, k)),
                pl.BlockSpec((1, tf), lambda i, k: (0, k)),
                pl.BlockSpec((tf, d_out_p), lambda i, k: (k, 0)),
                pl.BlockSpec((1, d_out_p), lambda i, k: (0, 0)),
            ],
            out_specs=pl.BlockSpec((tm, d_out_p), lambda i, k: (i, 0)),
            scratch_shapes=[pltpu.VMEM((tm, d_out_p), f32)],
        ),
        compiler_params=pltpu.CompilerParams(
            dimension_semantics=("parallel", "arbitrary")),
    )(xp, w1p, b1p, w2p, b2p)

    return out[:n, :d_model].reshape(orig_shape)


def ffn_reference(x, w1, b1, w2, b2):
    # Pure-JAX reference of the PyTorch module (exact erf GELU, highest precision).
    h = jnp.dot(x, w1, precision=jax.lax.Precision.HIGHEST) + b1
    h = 0.5 * h * (1.0 + jax.lax.erf(h * (1.0 / math.sqrt(2.0))))
    return jnp.dot(h, w2, precision=jax.lax.Precision.HIGHEST) + b2


if __name__ == "__main__":
    D_MODEL, D_FF, BATCH, SEQ = 32, 64, 2, 8
    key = jax.random.PRNGKey(0)
    kx, kw1, kb1, kw2, kb2 = jax.random.split(key, 5)

    x = jax.random.normal(kx, (BATCH, SEQ, D_MODEL), dtype=jnp.float32)
    # torch nn.Linear default init: U(-1/sqrt(fan_in), 1/sqrt(fan_in))
    bd1 = 1.0 / math.sqrt(D_MODEL)
    w1 = jax.random.uniform(kw1, (D_MODEL, D_FF), jnp.float32, -bd1, bd1)
    b1 = jax.random.uniform(kb1, (D_FF,), jnp.float32, -bd1, bd1)
    bd2 = 1.0 / math.sqrt(D_FF)
    w2 = jax.random.uniform(kw2, (D_FF, D_MODEL), jnp.float32, -bd2, bd2)
    b2 = jax.random.uniform(kb2, (D_MODEL,), jnp.float32, -bd2, bd2)

    ref = ffn_reference(x, w1, b1, w2, b2)

    # Default fast path: bf16 MXU inputs (f32 accumulation) + tanh GELU.
    out = positionwise_ffn(x, w1, b1, w2, b2)
    jax.block_until_ready(out)
    assert out.shape == x.shape and out.dtype == jnp.float32
    err_fast = float(jnp.max(jnp.abs(out - ref)))
    assert err_fast < 2e-2, f"fast-path max abs error too large: {err_fast}"

    # Strict parity path: f32 MXU + exact-erf GELU (matches torch nn.GELU()).
    out_exact = positionwise_ffn(x, w1, b1, w2, b2,
                                 use_bf16_matmul=False, gelu_mode="erf")
    jax.block_until_ready(out_exact)
    err_exact = float(jnp.max(jnp.abs(out_exact - ref)))
    assert err_exact < 2e-3, f"exact-path max abs error too large: {err_exact}"

    print("KERNEL_OK")
</pallas_src>

<mosaic_0001>
module attributes {stable_mosaic.version = 11 : i64} {
  func.func @kernel(%arg0: i32, %arg1: i32, %arg2: memref<16x32xf32, #tpu.memory_space<vmem>>, %arg3: memref<32x128xf32, #tpu.memory_space<vmem>>, %arg4: memref<1x128xf32, #tpu.memory_space<vmem>>, %arg5: memref<128x128xf32, #tpu.memory_space<vmem>>, %arg6: memref<1x128xf32, #tpu.memory_space<vmem>>, %arg7: memref<16x128xf32, #tpu.memory_space<vmem>>, %arg8: memref<16x128xf32, #tpu.memory_space<vmem>>) attributes {dimension_semantics = [#tpu.dimension_semantics<parallel>, #tpu.dimension_semantics<arbitrary>], iteration_bounds = array<i64: 1, 1>, scalar_prefetch = 0 : i64, scratch_operands = 1 : i64, tpu.core_type = #tpu.core_type<tc>, window_params = [{transform_indices = @transform_0, window_bounds = array<i64: 16, 32>}, {transform_indices = @transform_1, window_bounds = array<i64: 32, 128>}, {transform_indices = @transform_2, window_bounds = array<i64: 1, 128>}, {transform_indices = @transform_3, window_bounds = array<i64: 128, 128>}, {pipeline_mode = #tpu.pipeline_mode<synchronous>, transform_indices = @transform_4, window_bounds = array<i64: 1, 128>}, {transform_indices = @transform_5, window_bounds = array<i64: 16, 128>}]} {
    %c0_i32 = arith.constant 0 : i32
    %0 = arith.cmpi eq, %arg1, %c0_i32 : i32
    %1 = arith.extui %0 : i1 to i32
    %c0_i32_0 = arith.constant 0 : i32
    %2 = arith.cmpi ne, %1, %c0_i32_0 : i32
    scf.if %2 {
      %cst_19 = arith.constant 0.000000e+00 : f32
      %34 = vector.broadcast %cst_19 : f32 to vector<16x128xf32>
      %c0_20 = arith.constant 0 : index
      %c0_21 = arith.constant 0 : index
      %35 = vector.load %arg8[%c0_20, %c0_21] : memref<16x128xf32, #tpu.memory_space<vmem>>, vector<16x128xf32>
      tpu.vector_store %arg8[%c0_20, %c0_21], %34 {strides = array<i32>} : memref<16x128xf32, #tpu.memory_space<vmem>>, vector<16x128xf32>,
    } else {
    }
    %c0 = arith.constant 0 : index
    %c0_1 = arith.constant 0 : index
    %3 = vector.load %arg2[%c0, %c0_1] : memref<16x32xf32, #tpu.memory_space<vmem>>, vector<16x32xf32>
    %c0_2 = arith.constant 0 : index
    %c0_3 = arith.constant 0 : index
    %4 = vector.load %arg3[%c0_2, %c0_3] : memref<32x128xf32, #tpu.memory_space<vmem>>, vector<32x128xf32>
    %c0_4 = arith.constant 0 : index
    %c0_5 = arith.constant 0 : index
    %5 = vector.load %arg5[%c0_4, %c0_5] : memref<128x128xf32, #tpu.memory_space<vmem>>, vector<128x128xf32>
    %6 = arith.truncf %3 : vector<16x32xf32> to vector<16x32xbf16>
    %7 = arith.truncf %4 : vector<32x128xf32> to vector<32x128xbf16>
    %8 = arith.truncf %5 : vector<128x128xf32> to vector<128x128xbf16>
    %cst = arith.constant dense<0.000000e+00> : vector<16x128xf32>
    %9 = tpu.matmul %6, %7, %cst {dimension_numbers = #tpu.dot_dimension_numbers<[1], [0], [0], [1], [0, 0, 1, 1], [], []>} : vector<16x32xbf16>, vector<32x128xbf16>, vector<16x128xf32> -> vector<16x128xf32>
    %c0_6 = arith.constant 0 : index
    %c0_7 = arith.constant 0 : index
    %10 = vector.load %arg4[%c0_6, %c0_7] : memref<1x128xf32, #tpu.memory_space<vmem>>, vector<1x128xf32>
    %11 = vector.broadcast %10 : vector<1x128xf32> to vector<16x128xf32>
    %12 = arith.addf %9, %11 : vector<16x128xf32>
    %cst_8 = arith.constant 5.000000e-01 : f32
    %13 = vector.broadcast %cst_8 : f32 to vector<16x128xf32>
    %14 = arith.mulf %13, %12 : vector<16x128xf32>
    %cst_9 = arith.constant 4.471500e-02 : f32
    %15 = vector.broadcast %cst_9 : f32 to vector<16x128xf32>
    %16 = arith.mulf %15, %12 : vector<16x128xf32>
    %17 = arith.mulf %16, %12 : vector<16x128xf32>
    %18 = arith.mulf %17, %12 : vector<16x128xf32>
    %19 = arith.addf %12, %18 : vector<16x128xf32>
    %cst_10 = arith.constant 0.797884583 : f32
    %20 = vector.broadcast %cst_10 : f32 to vector<16x128xf32>
    %21 = arith.mulf %20, %19 : vector<16x128xf32>
    %22 = math.tanh %21 : vector<16x128xf32>
    %cst_11 = arith.constant 1.000000e+00 : f32
    %23 = vector.broadcast %cst_11 : f32 to vector<16x128xf32>
    %24 = arith.addf %23, %22 : vector<16x128xf32>
    %25 = arith.mulf %14, %24 : vector<16x128xf32>
    %26 = arith.truncf %25 : vector<16x128xf32> to vector<16x128xbf16>
    %c0_12 = arith.constant 0 : index
    %c0_13 = arith.constant 0 : index
    %27 = vector.load %arg8[%c0_12, %c0_13] : memref<16x128xf32, #tpu.memory_space<vmem>>, vector<16x128xf32>
    %cst_14 = arith.constant dense<0.000000e+00> : vector<16x128xf32>
    %28 = tpu.matmul %26, %8, %cst_14 {dimension_numbers = #tpu.dot_dimension_numbers<[1], [0], [0], [1], [0, 0, 1, 1], [], []>} : vector<16x128xbf16>, vector<128x128xbf16>, vector<16x128xf32> -> vector<16x128xf32>
    %29 = arith.addf %27, %28 : vector<16x128xf32>
    %c0_15 = arith.constant 0 : index
    %c0_16 = arith.constant 0 : index
    %30 = vector.load %arg8[%c0_15, %c0_16] : memref<16x128xf32, #tpu.memory_space<vmem>>, vector<16x128xf32>
    tpu.vector_store %arg8[%c0_15, %c0_16], %29 {strides = array<i32>} : memref<16x128xf32, #tpu.memory_space<vmem>>, vector<16x128xf32>,
    %c0_i32_17 = arith.constant 0 : i32
    %31 = arith.cmpi eq, %arg1, %c0_i32_17 : i32
    %32 = arith.extui %31 : i1 to i32
    %c0_i32_18 = arith.constant 0 : i32
    %33 = arith.cmpi ne, %32, %c0_i32_18 : i32
    scf.if %33 {
      %c0_19 = arith.constant 0 : index
      %c0_20 = arith.constant 0 : index
      %34 = vector.load %arg8[%c0_19, %c0_20] : memref<16x128xf32, #tpu.memory_space<vmem>>, vector<16x128xf32>
      %c0_21 = arith.constant 0 : index
      %c0_22 = arith.constant 0 : index
      %35 = vector.load %arg6[%c0_21, %c0_22] : memref<1x128xf32, #tpu.memory_space<vmem>>, vector<1x128xf32>
      %36 = vector.broadcast %35 : vector<1x128xf32> to vector<16x128xf32>
      %37 = arith.addf %34, %36 : vector<16x128xf32>
      %c0_23 = arith.constant 0 : index
      %c0_24 = arith.constant 0 : index
      %38 = vector.load %arg7[%c0_23, %c0_24] : memref<16x128xf32, #tpu.memory_space<vmem>>, vector<16x128xf32>
      tpu.vector_store %arg7[%c0_23, %c0_24], %37 {strides = array<i32>} : memref<16x128xf32, #tpu.memory_space<vmem>>, vector<16x128xf32>,
    } else {
    }
    return
  }
  func.func @transform_0(%arg0: i32, %arg1: i32) -> (i32, i32) {
    %c0_i32 = arith.constant 0 : i32
    %c0_i32_0 = arith.constant 0 : i32
    return %arg0, %c0_i32 : i32, i32
  }
  func.func @transform_1(%arg0: i32, %arg1: i32) -> (i32, i32) {
    %c0_i32 = arith.constant 0 : i32
    %c0_i32_0 = arith.constant 0 : i32
    return %c0_i32, %arg1 : i32, i32
  }
  func.func @transform_2(%arg0: i32, %arg1: i32) -> (i32, i32) {
    %c0_i32 = arith.constant 0 : i32
    %c0_i32_0 = arith.constant 0 : i32
    return %c0_i32, %arg1 : i32, i32
  }
  func.func @transform_3(%arg0: i32, %arg1: i32) -> (i32, i32) {
    %c0_i32 = arith.constant 0 : i32
    %c0_i32_0 = arith.constant 0 : i32
    return %arg1, %c0_i32 : i32, i32
  }
  func.func @transform_4(%arg0: i32, %arg1: i32) -> (i32, i32) {
    %c0_i32 = arith.constant 0 : i32
    %c0_i32_0 = arith.constant 0 : i32
    %c0_i32_1 = arith.constant 0 : i32
    return %c0_i32, %c0_i32_0 : i32, i32
  }
  func.func @transform_5(%arg0: i32, %arg1: i32) -> (i32, i32) {
    %c0_i32 = arith.constant 0 : i32
    %c0_i32_0 = arith.constant 0 : i32
    return %arg0, %c0_i32 : i32, i32
  }
}

</mosaic_0001>

<llo_original>
// kernel: tpu_custom_call.1
$region0: #{tpu_custom_call.1}
  #allocation0 [shape = 'u32[]', space=smem, size = 0x4, offset = 0x4, fixed_abs, tag = 'smem constant byte address 0x4 - core index']
  #allocation1 [shape = 'u32[72,128]{1,0:T(1,128)}', space=vmem, size = 0x9000, scoped, tag = 'internal scratch']
  #allocation2 [shape = 'f32[16,128]{1,0:T(8,128)}', space=vmem, size = 0x2000, scoped, tag = 'scratch operand']
  %s0 = inlined_call_operand.hbm [shape: f32[16,32], index: 0, kind: input, shape index: {}]
  %s1 = inlined_call_operand.hbm [shape: f32[32,128], index: 1, kind: input, shape index: {}]
  %s2 = inlined_call_operand.vmem [shape: f32[1,128], index: 2, kind: input, shape index: {}]
  %s3 = inlined_call_operand.hbm [shape: f32[128,128], index: 3, kind: input, shape index: {}]
  %s4 = inlined_call_operand.vmem [shape: f32[1,128], index: 4, kind: input, shape index: {}]
  %s5 = inlined_call_operand.hbm [shape: f32[16,128], index: 5, kind: output, shape index: {}]
  %s6 = sld [smem:[#allocation0]]
  $region50: #{tpu_custom_call.1} parent=0
    _
  %s8 = ssub.s32 1, %s6
  %s9 = scalar_select 0, %s8, %s6
  $region1: #{tpu_custom_call.1} parent=0
    #allocation3 [shape = 'u8[8192]{0}', space=vmem, size = 0x2000, scoped, tag = 'input window, operand 0, single buffered']
    #allocation4 [shape = 's32[1]{0}', space=sflag, size = 0x4, scoped, tag = 'scoped memory for tpu_custom_call.1']
    #allocation5 [shape = 's32[1]{0}', space=sflag, size = 0x4, scoped, tag = 'scoped memory for tpu_custom_call.1']
    #allocation6 [shape = 'u8[16384]{0}', space=vmem, size = 0x4000, scoped, tag = 'input window, operand 1, single buffered']
    #allocation7 [shape = 's32[1]{0}', space=sflag, size = 0x4, scoped, tag = 'scoped memory for tpu_custom_call.1']
    #allocation8 [shape = 'u8[65536]{0}', space=vmem, size = 0x10000, scoped, tag = 'input window, operand 3, single buffered']
    #allocation9 [shape = 'u8[8192]{0}', space=vmem, size = 0x2000, scoped, tag = 'output window, operand 0, single buffered']
    %10 = vsyncpa [#allocation4], 0
    %11 = vsyncpa [#allocation7], 0
    %12 = vsyncpa [#allocation5], 0
    // Predicated region
    $region2: #{tpu_custom_call.1} parent=1 // pred_check
      _
    $region3: #{tpu_custom_call.1} parent=1 // pred_check_branch
      %14 = sbr.rel (0) target = $region5
    $region4: #{tpu_custom_call.1} parent=1 // pred_region
      %16 = vsyncadd [#allocation4], 0
      %s17 = sshll.u32 %s0, 4
      %s18 = int_to_ptr.hbm [resolvable:$true] %s17
      %s19 = sshll.u32 [#allocation3], 4
      %s20 = int_to_ptr.vmem [resolvable:$true] %s19
      %25 = dma.hbm_to_vmem [thread:$0]  %s18, 256, %s20, [#allocation4], 128, 128, 8
    $region5: #{tpu_custom_call.1} parent=1 // pred_fallthru
      _
    // Predicated region
    $region6: #{tpu_custom_call.1} parent=1 // pred_check
      _
    $region7: #{tpu_custom_call.1} parent=1 // pred_check_branch
      %27 = sbr.rel (0) target = $region9
    $region8: #{tpu_custom_call.1} parent=1 // pred_region
      %29 = vsyncadd [#allocation7], 0
      %s30 = sshll.u32 %s1, 4
      %s31 = int_to_ptr.hbm [resolvable:$true] %s30
      %s32 = sshll.u32 [#allocation6], 4
      %s33 = int_to_ptr.vmem [resolvable:$true] %s32
      %38 = dma.hbm_to_vmem [thread:$0]  %s31, 512, %s33, [#allocation7], 128, 128, 8
    $region9: #{tpu_custom_call.1} parent=1 // pred_fallthru
      _
    // Predicated region
    $region10: #{tpu_custom_call.1} parent=1 // pred_check
      _
    $region11: #{tpu_custom_call.1} parent=1 // pred_check_branch
      %40 = sbr.rel (0) target = $region13
    $region12: #{tpu_custom_call.1} parent=1 // pred_region
      _
    $region13: #{tpu_custom_call.1} parent=1 // pred_fallthru
      _
    // Predicated region
    $region14: #{tpu_custom_call.1} parent=1 // pred_check
      _
    $region15: #{tpu_custom_call.1} parent=1 // pred_check_branch
      %42 = sbr.rel (0) target = $region17
    $region16: #{tpu_custom_call.1} parent=1 // pred_region
      %44 = vsyncadd [#allocation7], 0
      %s45 = sshll.u32 %s3, 4
      %s46 = int_to_ptr.hbm [resolvable:$true] %s45
      %s47 = sshll.u32 [#allocation8], 4
      %s48 = int_to_ptr.vmem [resolvable:$true] %s47
      %53 = dma.hbm_to_vmem [thread:$0]  %s46, 2048, %s48, [#allocation7], 128, 128, 8
    $region17: #{tpu_custom_call.1} parent=1 // pred_fallthru
      _
    // Predicated region
    $region18: #{tpu_custom_call.1} parent=1 // pred_check
      _
    $region19: #{tpu_custom_call.1} parent=1 // pred_check_branch
      %55 = sbr.rel (0) target = $region21
    $region20: #{tpu_custom_call.1} parent=1 // pred_region
      _
    $region21: #{tpu_custom_call.1} parent=1 // pred_fallthru
      _
    // Predicated region
    $region22: #{tpu_custom_call.1} parent=1 // pred_check
      _
    $region23: #{tpu_custom_call.1} parent=1 // pred_check_branch
      %57 = sbr.rel (0) target = $region25
    $region24: #{tpu_custom_call.1} parent=1 // pred_region
      %59 = dma.done [#allocation4], 256
    $region25: #{tpu_custom_call.1} parent=1 // pred_fallthru
      _
    // Predicated region
    $region26: #{tpu_custom_call.1} parent=1 // pred_check
      _
    $region27: #{tpu_custom_call.1} parent=1 // pred_check_branch
      %61 = sbr.rel (0) target = $region29
    $region28: #{tpu_custom_call.1} parent=1 // pred_region
      %63 = dma.done [#allocation7], 512
    $region29: #{tpu_custom_call.1} parent=1 // pred_fallthru
      _
    // Predicated region
    $region30: #{tpu_custom_call.1} parent=1 // pred_check
      _
    $region31: #{tpu_custom_call.1} parent=1 // pred_check_branch
      %65 = sbr.rel (0) target = $region33
    $region32: #{tpu_custom_call.1} parent=1 // pred_region
      %67 = dma.done [#allocation7], 2048
    $region33: #{tpu_custom_call.1} parent=1 // pred_fallthru
      _
    %p69 = scmp.eq.s32.totalorder 0, 0
    // Predicated region
    $region34: #{tpu_custom_call.1} parent=1 // pred_check
      %p70 = pneg %p69
    $region35: #{tpu_custom_call.1} parent=1 // pred_check_branch
      %72 = sbr.rel (%p70) target = $region37
    $region36: #{tpu_custom_call.1} parent=1 // pred_region
      %73 = vst [vmem:[#allocation2] sm:$0xff] 0.0
      %74 = vst [vmem:[#allocation2 + $0x8] sm:$0xff] 0.0
    $region37: #{tpu_custom_call.1} parent=1 // pred_fallthru
      _
    %v75 = vld [vmem:[#allocation3] sm:$0xff]
    %v76 = vld [vmem:[#allocation3 + $0x8] sm:$0xff]
    %v77 = vld [vmem:[#allocation6] sm:$0xff]
    %v78 = vld [vmem:[#allocation6 + $0x8] sm:$0xff]
    %v79 = vld [vmem:[#allocation6 + $0x10] sm:$0xff]
    %v80 = vld [vmem:[#allocation6 + $0x18] sm:$0xff]
    %v81 = vld [vmem:[#allocation8] sm:$0xff]
    %v82 = vld [vmem:[#allocation8 + $0x8] sm:$0xff]
    %v83 = vld [vmem:[#allocation8 + $0x10] sm:$0xff]
    %v84 = vld [vmem:[#allocation8 + $0x18] sm:$0xff]
    %v85 = vld [vmem:[#allocation8 + $0x20] sm:$0xff]
    %v86 = vld [vmem:[#allocation8 + $0x28] sm:$0xff]
    %v87 = vld [vmem:[#allocation8 + $0x30] sm:$0xff]
    %v88 = vld [vmem:[#allocation8 + $0x38] sm:$0xff]
    %v89 = vld [vmem:[#allocation8 + $0x40] sm:$0xff]
    %v90 = vld [vmem:[#allocation8 + $0x48] sm:$0xff]
    %v91 = vld [vmem:[#allocation8 + $0x50] sm:$0xff]
    %v92 = vld [vmem:[#allocation8 + $0x58] sm:$0xff]
    %v93 = vld [vmem:[#allocation8 + $0x60] sm:$0xff]
    %v94 = vld [vmem:[#allocation8 + $0x68] sm:$0xff]
    %v95 = vld [vmem:[#allocation8 + $0x70] sm:$0xff]
    %v96 = vld [vmem:[#allocation8 + $0x78] sm:$0xff]
    %v97 = vpack.c.bf16 %v76, %v75
    %v98 = vpack.c.bf16 %v78, %v77
    %v99 = vpack.c.bf16 %v80, %v79
    %v100 = vpack.c.bf16 %v82, %v81
    %v101 = vpack.c.bf16 %v84, %v83
    %v102 = vpack.c.bf16 %v86, %v85
    %v103 = vpack.c.bf16 %v88, %v87
    %v104 = vpack.c.bf16 %v90, %v89
    %v105 = vpack.c.bf16 %v92, %v91
    %v106 = vpack.c.bf16 %v94, %v93
    %v107 = vpack.c.bf16 %v96, %v95
    %v108 = vld [vmem:[%s2] sm:$0x1]
    %v110 = vperm.slane %v108, 0
    %vm112 = vcmask 261120
    %v114 = vsel %vm112, %v97, 0
    %116 = vmatpush.bf16.msra.mxu0 0
    %117 = vmatpush.bf16.msra.mxu0 0
    %118 = vmatpush.bf16.msra.mxu0 0
    %119 = vmatpush.bf16.msra.mxu0 0
    %120 = vmatpush.bf16.msra.mxu0 0
    %121 = vmatpush.bf16.msra.mxu0 0
    %122 = vmatpush.bf16.msra.mxu0 %v99
    %123 = vmatpush.bf16.msra.mxu0 %v98
    %124 = vmatmul.bf16.gmra.mxu0 %v114
    %v125 = vpop.f32.mrf.mxu0
    %v126 = vadd.f32 %v110, %v125
    %v127 = vpop.f32.mrf.mxu0
    %v128 = vadd.f32 %v110, %v127
    %129 = vdwg.mxu0
    %v130 = vmul.f32 %v126, 0.5
    %v131 = vmul.f32 %v128, 0.5
    %v132 = vmul.f32 %v126, 0.044715
    %v133 = vmul.f32 %v128, 0.044715
    %v134 = vmul.f32 %v132, %v126
    %v135 = vmul.f32 %v133, %v128
    %v136 = vmul.f32 %v134, %v126
    %v137 = vmul.f32 %v135, %v128
    %v138 = vadd.f32 %v126, %v136
    %v139 = vadd.f32 %v128, %v137
    %v140 = vmul.f32 %v138, 0.7978846
    %v141 = vmul.f32 %v139, 0.7978846
    %v142 = vtanh.pop %v140
    %v143 = vtanh.pop %v141
    %v144 = vadd.f32 %v142, 1.0
    %v145 = vadd.f32 %v143, 1.0
    %v146 = vmul.f32 %v130, %v144
    %v147 = vmul.f32 %v131, %v145
    %v148 = vpack.c.bf16 %v147, %v146
    %v149 = vld [vmem:[#allocation2] sm:$0xff]
    %v150 = vld [vmem:[#allocation2 + $0x8] sm:$0xff]
    %151 = vmatpush.bf16.msra.mxu0 %v107
    %152 = vmatpush.bf16.msra.mxu0 %v106
    %153 = vmatpush.bf16.msra.mxu0 %v105
    %154 = vmatpush.bf16.msra.mxu0 %v104
    %155 = vmatpush.bf16.msra.mxu0 %v103
    %156 = vmatpush.bf16.msra.mxu0 %v102
    %157 = vmatpush.bf16.msra.mxu0 %v101
    %158 = vmatpush.bf16.msra.mxu0 %v100
    %159 = vmatmul.bf16.gmra.mxu0 %v148
    %v160 = vpop.f32.mrf.mxu0
    %v161 = vadd.f32 0.0, %v160
    %v162 = vpop.f32.mrf.mxu0
    %v163 = vadd.f32 0.0, %v162
    %164 = vdwg.mxu0
    %v165 = vadd.f32 %v149, %v161
    %v166 = vadd.f32 %v150, %v163
    %167 = vst [vmem:[#allocation2] sm:$0xff] %v165
    %168 = vst [vmem:[#allocation2 + $0x8] sm:$0xff] %v166
    // Predicated region
    $region38: #{tpu_custom_call.1} parent=1 // pred_check
      %p169 = pneg %p69
    $region39: #{tpu_custom_call.1} parent=1 // pred_check_branch
      %171 = sbr.rel (%p169) target = $region41
    $region40: #{tpu_custom_call.1} parent=1 // pred_region
      %v172 = vld [vmem:[#allocation2] sm:$0xff]
      %v173 = vld [vmem:[#allocation2 + $0x8] sm:$0xff]
      %v174 = vld [vmem:[%s4] sm:$0x1]
      %v176 = vperm.slane %v174, 0
      %v178 = vadd.f32 %v172, %v176
      %v179 = vadd.f32 %v173, %v176
      %180 = vst [vmem:[#allocation9] sm:$0xff] %v178
      %181 = vst [vmem:[#allocation9 + $0x8] sm:$0xff] %v179
    $region41: #{tpu_custom_call.1} parent=1 // pred_fallthru
      _
    // Predicated region
    $region42: #{tpu_custom_call.1} parent=1 // pred_check
      _
    $region43: #{tpu_custom_call.1} parent=1 // pred_check_branch
      %183 = sbr.rel (0) target = $region45
    $region44: #{tpu_custom_call.1} parent=1 // pred_region
      %185 = vsyncadd [#allocation5], 0
      %s186 = sshll.u32 [#allocation9], 4
      %s187 = int_to_ptr.vmem [resolvable:$true] %s186
      %s188 = sshll.u32 %s5, 4
      %s189 = int_to_ptr.hbm [resolvable:$true] %s188
      %194 = dma.vmem_to_hbm [thread:$0]  %s187, 256, %s189, [#allocation5], 128, 128, 8
    $region45: #{tpu_custom_call.1} parent=1 // pred_fallthru
      _
    // Predicated region
    $region46: #{tpu_custom_call.1} parent=1 // pred_check
      _
    $region47: #{tpu_custom_call.1} parent=1 // pred_check_branch
      %196 = sbr.rel (0) target = $region49
    $region48: #{tpu_custom_call.1} parent=1 // pred_region
      %198 = dma.done [#allocation5], 256
    $region49: #{tpu_custom_call.1} parent=1 // pred_fallthru
      _
    %199 = vsyncpa [#allocation4], 1
    %200 = vsyncpa [#allocation7], 1
    %201 = vsyncpa [#allocation5], 1

</llo_original>
